<compile_context>
chip_gen: v7x
topology: tpu7x:2x2x1
jax: 0.10.0
libtpu: 0.0.40
codegen_flags: <defaults>
</compile_context>

<pallas_src>
import jax
import jax.numpy as jnp
from jax.experimental import pallas as pl
from jax.experimental.pallas import tpu as pltpu


def _make_fused_kernel(n_layers, in_ch):
    """Fused kernel: n_layers of HyperSAGE message passing + pooled linear head.

    Ref order: x [N, Cin], inc [N, E], w_stack [L, C, C], head [2, C], out [1, 1].
    """

    def kernel(x_ref, inc_ref, w_ref, head_ref, o_ref):
        inc = inc_ref[...]                                            # [N, E]

        # Degrees + reciprocals, computed once in-kernel (XLU reduce + VPU div).
        # Clamped so empty hyperedges / isolated nodes contribute exact zeros.
        inv_e = 1.0 / jnp.maximum(jnp.sum(inc, axis=0, keepdims=True), 1.0)  # [1, E]
        inv_n = 1.0 / jnp.maximum(jnp.sum(inc, axis=1, keepdims=True), 1.0)  # [N, 1]

        # Composite intra+inter aggregation operator, computed once and reused
        # by every layer:  M = inc @ diag(1/|e|) @ inc.T            [N, N]
        m = jnp.einsum("ne,me->nm", inc * inv_e, inc,
                       preferred_element_type=jnp.float32)

        h = x_ref[...]                                                # [N, Cin]
        for l in range(n_layers):                                     # static unroll
            w = w_ref[l]                                              # [C, C]
            if l == 0:
                w = w[:in_ch, :]                                      # un-padded W0

            # inter_v = sqrt( (1/deg v) * sum_{e∋v} (1/|e|) * sum_{u∈e} h_u^2 )
            inter = jnp.sqrt(
                jnp.dot(m, h * h, preferred_element_type=jnp.float32) * inv_n)
            # update: relu(inter @ W)
            h = jnp.maximum(
                jnp.dot(inter, w, preferred_element_type=jnp.float32), 0.0)

        # Head: global max pool -> linear (VPU mul + lane reduce) -> sigmoid.
        pooled = jnp.max(h, axis=0, keepdims=True)                    # [1, C]
        logit = (jnp.sum(pooled * head_ref[0:1, :], axis=-1, keepdims=True)
                 + head_ref[1:2, 0:1])                                # [1, 1]
        o_ref[...] = jax.nn.sigmoid(logit)

    return kernel


def pack_hypersage_params(layer_weights, lin_w, lin_b):
    """One-time parameter packing (outside the per-call hot path)."""
    out_ch = layer_weights[0].shape[1]
    in_ch = layer_weights[0].shape[0]
    stacked = []
    for w in layer_weights:
        w = w.astype(jnp.float32)
        if w.shape[0] < out_ch:
            w = jnp.pad(w, ((0, out_ch - w.shape[0]), (0, 0)))       # zero rows
        stacked.append(w)
    w_stack = jnp.stack(stacked)                                      # [L, C, C]
    head = jnp.zeros((2, out_ch), jnp.float32)
    head = head.at[0, :].set(lin_w.reshape(-1).astype(jnp.float32))  # row0 = lin_w
    head = head.at[1, 0].set(jnp.asarray(lin_b, jnp.float32).reshape(()))  # b
    return {"w_stack": w_stack, "head": head, "in_channels": in_ch}


def hypersage_forward(x, incidence, packed):
    """Full HyperSAGE forward in a single grid-less pallas_call (4 operands)."""
    n_layers = packed["w_stack"].shape[0]
    in_ch = packed["in_channels"]
    out = pl.pallas_call(
        _make_fused_kernel(n_layers, in_ch),
        out_shape=jax.ShapeDtypeStruct((1, 1), jnp.float32),
        in_specs=[pl.BlockSpec(memory_space=pltpu.MemorySpace.VMEM)] * 4,
        out_specs=pl.BlockSpec(memory_space=pltpu.MemorySpace.VMEM),
    )(x.astype(jnp.float32), incidence.astype(jnp.float32),
      packed["w_stack"], packed["head"])
    return out.reshape(())  # matches torch `...[0]` -> 0-dim scalar


def _reference_forward(x, incidence, layer_weights, lin_w, lin_b):
    """Pure-JAX reference using the original sqrt/square chain."""
    inv_e = 1.0 / jnp.maximum(jnp.sum(incidence, axis=0, keepdims=True), 1.0)  # [1,E]
    inv_n = 1.0 / jnp.maximum(jnp.sum(incidence, axis=1, keepdims=True), 1.0)  # [N,1]
    h = x
    for w in layer_weights:
        intra = jnp.sqrt((incidence.T @ (h * h)) * inv_e.T)
        inter = jnp.sqrt((incidence @ (intra * intra)) * inv_n)
        h = jnp.maximum(inter @ w, 0.0)
    pooled = jnp.max(h, axis=0, keepdims=True)
    return jax.nn.sigmoid(pooled @ lin_w + lin_b).reshape(())


if __name__ == "__main__":
    key = jax.random.PRNGKey(0)
    n_nodes, n_edges = 16, 8
    in_ch, out_ch, n_layers = 8, 32, 2

    k_x, k_inc, k_w, k_lw, k_lb = jax.random.split(key, 5)

    x = jax.random.normal(k_x, (n_nodes, in_ch), dtype=jnp.float32)

    # binary incidence; guarantee every node has >=1 edge and every edge >=1 node
    inc = (jax.random.uniform(k_inc, (n_nodes, n_edges)) < 0.4).astype(jnp.float32)
    inc = inc.at[jnp.arange(n_nodes), jnp.arange(n_nodes) % n_edges].set(1.0)

    def uniform_init(k, shape, fan_in):
        bound = 1.0 / (fan_in ** 0.5)
        return jax.random.uniform(k, shape, jnp.float32, -bound, bound)

    layer_keys = jax.random.split(k_w, n_layers)
    layer_weights = [uniform_init(layer_keys[0], (in_ch, out_ch), in_ch)]
    for i in range(1, n_layers):
        layer_weights.append(uniform_init(layer_keys[i], (out_ch, out_ch), out_ch))
    lin_w = uniform_init(k_lw, (out_ch, 1), out_ch)
    lin_b = uniform_init(k_lb, (1, 1), out_ch)

    packed = pack_hypersage_params(layer_weights, lin_w, lin_b)

    out = hypersage_forward(x, inc, packed)
    jax.block_until_ready(out)

    ref = _reference_forward(x, inc, layer_weights, lin_w, lin_b)
    assert out.shape == () and jnp.isfinite(out)
    assert jnp.allclose(out, ref, rtol=1e-5, atol=1e-5), (out, ref)
    print("KERNEL_OK")
</pallas_src>

<mosaic_0001>
module attributes {stable_mosaic.version = 11 : i64} {
  func.func @kernel(%arg0: memref<16x8xf32, #tpu.memory_space<vmem>>, %arg1: memref<16x8xf32, #tpu.memory_space<vmem>>, %arg2: memref<2x32x32xf32, #tpu.memory_space<vmem>>, %arg3: memref<2x32xf32, #tpu.memory_space<vmem>>, %arg4: memref<1x1xf32, #tpu.memory_space<vmem>>) attributes {dimension_semantics = [], scalar_prefetch = 0 : i64, scratch_operands = 0 : i64, tpu.core_type = #tpu.core_type<tc>} {
    %c0 = arith.constant 0 : index
    %c0_0 = arith.constant 0 : index
    %0 = vector.load %arg1[%c0, %c0_0] : memref<16x8xf32, #tpu.memory_space<vmem>>, vector<16x8xf32>
    %cst = arith.constant dense<0.000000e+00> : vector<8xf32>
    %1 = vector.multi_reduction <add>, %0, %cst [0] : vector<16x8xf32> to vector<8xf32>
    %2 = vector.shape_cast %1 : vector<8xf32> to vector<1x8xf32>
    %cst_1 = arith.constant 1.000000e+00 : f32
    %3 = vector.broadcast %cst_1 : f32 to vector<1x8xf32>
    %4 = arith.maximumf %2, %3 : vector<1x8xf32>
    %cst_2 = arith.constant 1.000000e+00 : f32
    %5 = vector.broadcast %cst_2 : f32 to vector<1x8xf32>
    %6 = arith.divf %5, %4 : vector<1x8xf32>
    %cst_3 = arith.constant dense<0.000000e+00> : vector<16xf32>
    %7 = vector.multi_reduction <add>, %0, %cst_3 [1] : vector<16x8xf32> to vector<16xf32>
    %8 = vector.shape_cast %7 : vector<16xf32> to vector<16x1xf32>
    %cst_4 = arith.constant 1.000000e+00 : f32
    %9 = vector.broadcast %cst_4 : f32 to vector<16x1xf32>
    %10 = arith.maximumf %8, %9 : vector<16x1xf32>
    %cst_5 = arith.constant 1.000000e+00 : f32
    %11 = vector.broadcast %cst_5 : f32 to vector<16x1xf32>
    %12 = arith.divf %11, %10 : vector<16x1xf32>
    %13 = vector.broadcast %6 : vector<1x8xf32> to vector<16x8xf32>
    %14 = arith.mulf %0, %13 : vector<16x8xf32>
    "tpu.trace_start"() <{level = 10 : i32, message = "ne,me->nm"}> : () -> ()
    %cst_6 = arith.constant dense<0.000000e+00> : vector<16x16xf32>
    %15 = tpu.matmul %14, %0, %cst_6 {dimension_numbers = #tpu.dot_dimension_numbers<[1], [1], [0], [0], [0, 0, 1, 0], [], []>} : vector<16x8xf32>, vector<16x8xf32>, vector<16x16xf32> -> vector<16x16xf32>
    "tpu.trace_stop"() : () -> ()
    %c0_7 = arith.constant 0 : index
    %c0_8 = arith.constant 0 : index
    %16 = vector.load %arg0[%c0_7, %c0_8] : memref<16x8xf32, #tpu.memory_space<vmem>>, vector<16x8xf32>
    %c0_9 = arith.constant 0 : index
    %c0_10 = arith.constant 0 : index
    %c0_11 = arith.constant 0 : index
    %17 = vector.load %arg2[%c0_9, %c0_10, %c0_11] : memref<2x32x32xf32, #tpu.memory_space<vmem>>, vector<1x32x32xf32>
    %18 = vector.shape_cast %17 : vector<1x32x32xf32> to vector<32x32xf32>
    %19 = vector.extract_strided_slice %18 {offsets = [0, 0], sizes = [8, 32], strides = [1, 1]} : vector<32x32xf32> to vector<8x32xf32>
    %20 = arith.mulf %16, %16 : vector<16x8xf32>
    %cst_12 = arith.constant dense<0.000000e+00> : vector<16x8xf32>
    %21 = tpu.matmul %15, %20, %cst_12 {dimension_numbers = #tpu.dot_dimension_numbers<[1], [0], [0], [1], [0, 0, 1, 1], [], []>} : vector<16x16xf32>, vector<16x8xf32>, vector<16x8xf32> -> vector<16x8xf32>
    %22 = vector.broadcast %12 : vector<16x1xf32> to vector<16x8xf32>
    %23 = arith.mulf %21, %22 : vector<16x8xf32>
    %24 = math.sqrt %23 : vector<16x8xf32>
    %cst_13 = arith.constant dense<0.000000e+00> : vector<16x32xf32>
    %25 = tpu.matmul %24, %19, %cst_13 {dimension_numbers = #tpu.dot_dimension_numbers<[1], [0], [0], [1], [0, 0, 1, 1], [], []>} : vector<16x8xf32>, vector<8x32xf32>, vector<16x32xf32> -> vector<16x32xf32>
    %cst_14 = arith.constant 0.000000e+00 : f32
    %26 = vector.broadcast %cst_14 : f32 to vector<16x32xf32>
    %27 = arith.maximumf %25, %26 : vector<16x32xf32>
    %c1 = arith.constant 1 : index
    %c0_15 = arith.constant 0 : index
    %c0_16 = arith.constant 0 : index
    %28 = vector.load %arg2[%c1, %c0_15, %c0_16] : memref<2x32x32xf32, #tpu.memory_space<vmem>>, vector<1x32x32xf32>
    %29 = vector.shape_cast %28 : vector<1x32x32xf32> to vector<32x32xf32>
    %30 = arith.mulf %27, %27 : vector<16x32xf32>
    %cst_17 = arith.constant dense<0.000000e+00> : vector<16x32xf32>
    %31 = tpu.matmul %15, %30, %cst_17 {dimension_numbers = #tpu.dot_dimension_numbers<[1], [0], [0], [1], [0, 0, 1, 1], [], []>} : vector<16x16xf32>, vector<16x32xf32>, vector<16x32xf32> -> vector<16x32xf32>
    %32 = vector.broadcast %12 : vector<16x1xf32> to vector<16x32xf32>
    %33 = arith.mulf %31, %32 : vector<16x32xf32>
    %34 = math.sqrt %33 : vector<16x32xf32>
    %cst_18 = arith.constant dense<0.000000e+00> : vector<16x32xf32>
    %35 = tpu.matmul %34, %29, %cst_18 {dimension_numbers = #tpu.dot_dimension_numbers<[1], [0], [0], [1], [0, 0, 1, 1], [], []>} : vector<16x32xf32>, vector<32x32xf32>, vector<16x32xf32> -> vector<16x32xf32>
    %cst_19 = arith.constant 0.000000e+00 : f32
    %36 = vector.broadcast %cst_19 : f32 to vector<16x32xf32>
    %37 = arith.maximumf %35, %36 : vector<16x32xf32>
    %cst_20 = arith.constant dense<0xFF800000> : vector<32xf32>
    %38 = vector.multi_reduction <maximumf>, %37, %cst_20 [0] : vector<16x32xf32> to vector<32xf32>
    %39 = vector.shape_cast %38 : vector<32xf32> to vector<1x32xf32>
    %c0_21 = arith.constant 0 : index
    %c0_22 = arith.constant 0 : index
    %40 = vector.load %arg3[%c0_21, %c0_22] : memref<2x32xf32, #tpu.memory_space<vmem>>, vector<1x32xf32>
    %41 = arith.mulf %39, %40 : vector<1x32xf32>
    %cst_23 = arith.constant dense<0.000000e+00> : vector<1xf32>
    %42 = vector.multi_reduction <add>, %41, %cst_23 [1] : vector<1x32xf32> to vector<1xf32>
    %43 = vector.shape_cast %42 : vector<1xf32> to vector<1x1xf32>
    %c1_24 = arith.constant 1 : index
    %c0_25 = arith.constant 0 : index
    %44 = vector.load %arg3[%c1_24, %c0_25] : memref<2x32xf32, #tpu.memory_space<vmem>>, vector<1x1xf32>
    %45 = arith.addf %43, %44 : vector<1x1xf32>
    %46 = arith.negf %45 : vector<1x1xf32>
    %47 = math.exp %46 : vector<1x1xf32>
    %cst_26 = arith.constant 1.000000e+00 : f32
    %48 = vector.broadcast %cst_26 : f32 to vector<1x1xf32>
    %49 = arith.addf %48, %47 : vector<1x1xf32>
    %50 = arith.divf %48, %49 : vector<1x1xf32>
    %c0_27 = arith.constant 0 : index
    %c0_28 = arith.constant 0 : index
    %51 = vector.load %arg4[%c0_27, %c0_28] : memref<1x1xf32, #tpu.memory_space<vmem>>, vector<1x1xf32>
    tpu.vector_store %arg4[%c0_27, %c0_28], %50 {strides = array<i32>} : memref<1x1xf32, #tpu.memory_space<vmem>>, vector<1x1xf32>,
    return
  }
}

</mosaic_0001>

<llo_original>
// kernel: tpu_custom_call.1
$region0: #{tpu_custom_call.1}
  #allocation0 [shape = 'u32[]', space=smem, size = 0x4, offset = 0x4, fixed_abs, tag = 'smem constant byte address 0x4 - core index']
  #allocation1 [shape = 'u32[144,128]{1,0:T(1,128)}', space=vmem, size = 0x12000, scoped, tag = 'internal scratch']
  %s0 = inlined_call_operand.vmem [shape: f32[16,8], index: 0, kind: input, shape index: {}]
  %s1 = inlined_call_operand.vmem [shape: f32[16,8], index: 1, kind: input, shape index: {}]
  %s2 = inlined_call_operand.hbm [shape: f32[2,32,32], index: 2, kind: input, shape index: {}]
  %s3 = inlined_call_operand.vmem [shape: f32[2,32], index: 3, kind: input, shape index: {}]
  %s4 = inlined_call_operand.hbm [shape: f32[1,1], index: 4, kind: output, shape index: {}]
  %s5 = sld [smem:[#allocation0]]
  $region30: #{tpu_custom_call.1} parent=0
    _
  %s7 = ssub.s32 1, %s5
  %s8 = scalar_select 0, %s7, %s5
  $region1: #{tpu_custom_call.1} parent=0
    #allocation2 [shape = 'u8[32768]{0}', space=vmem, size = 0x8000, scoped, tag = 'input window, operand 2, single buffered']
    #allocation3 [shape = 's32[1]{0}', space=sflag, size = 0x4, scoped, tag = 'scoped memory for tpu_custom_call.1']
    #allocation4 [shape = 's32[1]{0}', space=sflag, size = 0x4, scoped, tag = 'scoped memory for tpu_custom_call.1']
    #allocation5 [shape = 'u8[512]{0}', space=vmem, size = 0x400, scoped, tag = 'output window, operand 0, single buffered']
    %9 = vsyncpa [#allocation3], 0
    %10 = vsyncpa [#allocation4], 0
    // Predicated region
    $region2: #{tpu_custom_call.1} parent=1 // pred_check
      _
    $region3: #{tpu_custom_call.1} parent=1 // pred_check_branch
      %12 = sbr.rel (0) target = $region5
    $region4: #{tpu_custom_call.1} parent=1 // pred_region
      _
    $region5: #{tpu_custom_call.1} parent=1 // pred_fallthru
      _
    // Predicated region
    $region6: #{tpu_custom_call.1} parent=1 // pred_check
      _
    $region7: #{tpu_custom_call.1} parent=1 // pred_check_branch
      %14 = sbr.rel (0) target = $region9
    $region8: #{tpu_custom_call.1} parent=1 // pred_region
      _
    $region9: #{tpu_custom_call.1} parent=1 // pred_fallthru
      _
    // Predicated region
    $region10: #{tpu_custom_call.1} parent=1 // pred_check
      _
    $region11: #{tpu_custom_call.1} parent=1 // pred_check_branch
      %16 = sbr.rel (0) target = $region13
    $region12: #{tpu_custom_call.1} parent=1 // pred_region
      %s18 = ssub.s32 1024, 1024
      %19 = vsyncadd [#allocation3], %s18
      %s20 = sshll.u32 [#allocation2], 4
      %s21 = int_to_ptr.vmem [resolvable:$true] %s20
      %26 = dma.hbm_to_vmem [thread:$0]  %s2, 1024, %s21, [#allocation3], 128, 128, 8
    $region13: #{tpu_custom_call.1} parent=1 // pred_fallthru
      _
    // Predicated region
    $region14: #{tpu_custom_call.1} parent=1 // pred_check
      _
    $region15: #{tpu_custom_call.1} parent=1 // pred_check_branch
      %28 = sbr.rel (0) target = $region17
    $region16: #{tpu_custom_call.1} parent=1 // pred_region
      _
    $region17: #{tpu_custom_call.1} parent=1 // pred_fallthru
      _
    // Predicated region
    $region18: #{tpu_custom_call.1} parent=1 // pred_check
      _
    $region19: #{tpu_custom_call.1} parent=1 // pred_check_branch
      %30 = sbr.rel (0) target = $region21
    $region20: #{tpu_custom_call.1} parent=1 // pred_region
      %31 = dma.done [#allocation3], 1024
    $region21: #{tpu_custom_call.1} parent=1 // pred_fallthru
      _
    %v32 = vld [vmem:[%s1] sm:$0xff]
    %v33 = vld [vmem:[%s1 + $0x8] sm:$0xff]
    %vm34 = vcmask 64512
    %v35 = vsel %vm34, %v32, 0.0
    %v36 = vsel %vm34, %v33, 0.0
    %v37 = vadd.f32 %v35, %v36
    %v38 = vrot.slane %v37, 4
    %v39 = vadd.f32 %v37, %v38
    %v40 = vrot.slane %v39, 2
    %v41 = vadd.f32 %v39, %v40
    %v42 = vrot.slane %v41, 1
    %v43 = vadd.f32 %v41, %v42
    %v44 = vmax.f32 %v43, 1.0
    %v45 = vrcp.pop %v44
    %v46 = vmul.f32 1.0, %v45
    %47 = vadd.xlane.f32.xlu0 %v35
    %v48 = vpop.xlane.xlu0 %47
    %49 = vadd.xlane.f32.xlu0 %v36
    %v50 = vpop.xlane.xlu0 %49
    %v51 = vmax.f32 %v48, 1.0
    %v52 = vmax.f32 %v50, 1.0
    %v53 = vrcp.pop %v51
    %v54 = vmul.f32 1.0, %v53
    %v55 = vrcp.pop %v52
    %v56 = vmul.f32 1.0, %v55
    %v57 = vmul.f32 %v32, %v46
    %v58 = vmul.f32 %v33, %v46
    %v60 = vsel %vm34, %v57, 0
    %v63 = vsel %vm34, %v58, 0
    %v66 = vsel %vm34, %v32, 0
    %v69 = vsel %vm34, %v33, 0
    %71 = vmatprep.subr.mxu0 0.0
    %72 = vmatpush1.xpose.msra.mxu0 %v66
    %73 = vmatprep.subr.mxu0 0.0
    %74 = vmatpush1.xpose.msra.mxu0 %v69
    %75 = vmatprep.subr.mxu0 0.0
    %76 = vmatpush1.xpose.msra.mxu0 0.0
    %77 = vmatprep.subr.mxu0 0.0
    %78 = vmatpush1.xpose.msra.mxu0 0.0
    %79 = vmatprep.subr.mxu0 0.0
    %80 = vmatpush1.xpose.msra.mxu0 0.0
    %81 = vmatprep.subr.mxu0 0.0
    %82 = vmatpush1.xpose.msra.mxu0 0.0
    %83 = vmatprep.subr.mxu0 0.0
    %84 = vmatpush1.xpose.msra.mxu0 0.0
    %85 = vmatprep.subr.mxu0 0.0
    %86 = vmatpush1.xpose.msra.mxu0 0.0
    %87 = vmatprep.subr.mxu0 0.0
    %88 = vmatpush1.xpose.msra.mxu0 0.0
    %89 = vmatprep.subr.mxu0 0.0
    %90 = vmatpush1.xpose.msra.mxu0 0.0
    %91 = vmatprep.subr.mxu0 0.0
    %92 = vmatpush1.xpose.msra.mxu0 0.0
    %93 = vmatprep.subr.mxu0 0.0
    %94 = vmatpush1.xpose.msra.mxu0 0.0
    %95 = vmatprep.subr.mxu0 0.0
    %96 = vmatpush1.xpose.msra.mxu0 0.0
    %97 = vmatprep.subr.mxu0 0.0
    %98 = vmatpush1.xpose.msra.mxu0 0.0
    %99 = vmatprep.subr.mxu0 0.0
    %100 = vmatpush1.xpose.msra.mxu0 0.0
    %101 = vmatprep.subr.mxu0 0.0
    %102 = vmatpush1.xpose.msra.mxu0 0.0
    %103 = vmatprep.subr.mxu0 0.0
    %104 = vmatpush1.xpose.msra.mxu0 0.0
    %105 = vmatprep.subr.mxu0 0.0
    %106 = vmatpush1.xpose.msra.mxu0 0.0
    %107 = vmatprep.subr.mxu0 0.0
    %108 = vmatpush1.xpose.msra.mxu0 0.0
    %109 = vmatprep.subr.mxu0 0.0
    %110 = vmatpush1.xpose.msra.mxu0 0.0
    %111 = vmatprep.subr.mxu0 0.0
    %112 = vmatpush1.xpose.msra.mxu0 0.0
    %113 = vmatprep.subr.mxu0 0.0
    %114 = vmatpush1.xpose.msra.mxu0 0.0
    %115 = vmatprep.subr.mxu0 0.0
    %116 = vmatpush1.xpose.msra.mxu0 0.0
    %117 = vmatprep.subr.mxu0 0.0
    %118 = vmatpush1.xpose.msra.mxu0 0.0
    %119 = vmatprep.subr.mxu0 0.0
    %120 = vmatpush1.xpose.msra.mxu0 0.0
    %121 = vmatprep.subr.mxu0 0.0
    %122 = vmatpush1.xpose.msra.mxu0 0.0
    %123 = vmatprep.subr.mxu0 0.0
    %124 = vmatpush1.xpose.msra.mxu0 0.0
    %125 = vmatprep.subr.mxu0 0.0
    %126 = vmatpush1.xpose.msra.mxu0 0.0
    %127 = vmatprep.subr.mxu0 0.0
    %128 = vmatpush1.xpose.msra.mxu0 0.0
    %129 = vmatprep.subr.mxu0 0.0
    %130 = vmatpush1.xpose.msra.mxu0 0.0
    %131 = vmatprep.subr.mxu0 0.0
    %132 = vmatpush1.xpose.msra.mxu0 0.0
    %133 = vmatprep.subr.mxu0 0.0
    %134 = vmatpush1.xpose.msra.mxu0 0.0
    %135 = vmatprep.mubr.f32.mxu0 0.0
    %136 = vmatmul.mubr.f32.gmra.mrb[0].mxu0 %v60
    %v137 = vpop.f32.mrb[0].mxu0
    %v138 = vadd.f32 0.0, %v137
    %v139 = vpop.f32.mrb[0].mxu0
    %140 = vmatprep.mubr.f32.mxu0 0.0
    %141 = vmatmul.mubr.f32.gmra.mrb[0].mxu0 %v63
    %v142 = vpop.f32.mrb[0].mxu0
    %v143 = vadd.f32 0.0, %v142
    %v144 = vpop.f32.mrb[0].mxu0
    %145 = vdwg.mxu0
    %v146 = vld [vmem:[%s0] sm:$0xff]
    %v147 = vld [vmem:[%s0 + $0x8] sm:$0xff]
    %v148 = vld [vmem:[#allocation2] sm:$0xff]
    %v149 = vmul.f32 %v146, %v146
    %v150 = vmul.f32 %v147, %v147
    %vm151 = vcmask 130048
    %v153 = vsel %vm151, %v138, 0
    %v156 = vsel %vm151, %v143, 0
    %158 = vmatprep.subr.mxu0 0.0
    %159 = vmatpush1.msra.mxu0 %v149
    %160 = vmatprep.subr.mxu0 0.0
    %161 = vmatpush1.msra.mxu0 %v150
    %162 = vmatprep.subr.mxu0 0.0
    %163 = vmatpush1.msra.mxu0 0.0
    %164 = vmatprep.subr.mxu0 0.0
    %165 = vmatpush1.msra.mxu0 0.0
    %166 = vmatprep.subr.mxu0 0.0
    %167 = vmatpush1.msra.mxu0 0.0
    %168 = vmatprep.subr.mxu0 0.0
    %169 = vmatpush1.msra.mxu0 0.0
    %170 = vmatprep.subr.mxu0 0.0
    %171 = vmatpush1.msra.mxu0 0.0
    %172 = vmatprep.subr.mxu0 0.0
    %173 = vmatpush1.msra.mxu0 0.0
    %174 = vmatprep.subr.mxu0 0.0
    %175 = vmatpush1.msra.mxu0 0.0
    %176 = vmatprep.subr.mxu0 0.0
    %177 = vmatpush1.msra.mxu0 0.0
    %178 = vmatprep.subr.mxu0 0.0
    %179 = vmatpush1.msra.mxu0 0.0
    %180 = vmatprep.subr.mxu0 0.0
    %181 = vmatpush1.msra.mxu0 0.0
    %182 = vmatprep.subr.mxu0 0.0
    %183 = vmatpush1.msra.mxu0 0.0
    %184 = vmatprep.subr.mxu0 0.0
    %185 = vmatpush1.msra.mxu0 0.0
    %186 = vmatprep.subr.mxu0 0.0
    %187 = vmatpush1.msra.mxu0 0.0
    %188 = vmatprep.subr.mxu0 0.0
    %189 = vmatpush1.msra.mxu0 0.0
    %190 = vmatprep.subr.mxu0 0.0
    %191 = vmatpush1.msra.mxu0 0.0
    %192 = vmatprep.subr.mxu0 0.0
    %193 = vmatpush1.msra.mxu0 0.0
    %194 = vmatprep.subr.mxu0 0.0
    %195 = vmatpush1.msra.mxu0 0.0
    %196 = vmatprep.subr.mxu0 0.0
    %197 = vmatpush1.msra.mxu0 0.0
    %198 = vmatprep.subr.mxu0 0.0
    %199 = vmatpush1.msra.mxu0 0.0
    %200 = vmatprep.subr.mxu0 0.0
    %201 = vmatpush1.msra.mxu0 0.0
    %202 = vmatprep.subr.mxu0 0.0
    %203 = vmatpush1.msra.mxu0 0.0
    %204 = vmatprep.subr.mxu0 0.0
    %205 = vmatpush1.msra.mxu0 0.0
    %206 = vmatprep.subr.mxu0 0.0
    %207 = vmatpush1.msra.mxu0 0.0
    %208 = vmatprep.subr.mxu0 0.0
    %209 = vmatpush1.msra.mxu0 0.0
    %210 = vmatprep.subr.mxu0 0.0
    %211 = vmatpush1.msra.mxu0 0.0
    %212 = vmatprep.subr.mxu0 0.0
    %213 = vmatpush1.msra.mxu0 0.0
    %214 = vmatprep.subr.mxu0 0.0
    %215 = vmatpush1.msra.mxu0 0.0
    %216 = vmatprep.subr.mxu0 0.0
    %217 = vmatpush1.msra.mxu0 0.0
    %218 = vmatprep.subr.mxu0 0.0
    %219 = vmatpush1.msra.mxu0 0.0
    %220 = vmatprep.subr.mxu0 0.0
    %221 = vmatpush1.msra.mxu0 0.0
    %222 = vmatprep.mubr.f32.mxu0 0.0
    %223 = vmatmul.mubr.f32.gmra.mrb[0].mxu0 %v153
    %v224 = vpop.f32.mrb[0].mxu0
    %v225 = vadd.f32 0.0, %v224
    %v226 = vpop.f32.mrb[0].mxu0
    %227 = vmatprep.mubr.f32.mxu0 0.0
    %228 = vmatmul.mubr.f32.gmra.mrb[0].mxu0 %v156
    %v229 = vpop.f32.mrb[0].mxu0
    %v230 = vadd.f32 0.0, %v229
    %v231 = vpop.f32.mrb[0].mxu0
    %232 = vdwg.mxu0
    %v233 = vmul.f32 %v225, %v54
    %v234 = vmul.f32 %v230, %v56
    %v235 = vrsqrt.pop %v233
    %v236 = vmul.f32 %v233, %v235
    %vm237 = vcmp.eq.f32.partialorder %v233, inf
    %v238 = vsel %vm237, %v233, %v236
    %vm239 = vcmp.eq.f32.partialorder %v233, 0.0
    %v240 = vand.u32 %v233, 2147483648
    %v241 = vsel %vm239, %v240, %v238
    %v242 = vrsqrt.pop %v234
    %v243 = vmul.f32 %v234, %v242
    %vm244 = vcmp.eq.f32.partialorder %v234, inf
    %v245 = vsel %vm244, %v234, %v243
    %vm246 = vcmp.eq.f32.partialorder %v234, 0.0
    %v247 = vand.u32 %v234, 2147483648
    %v248 = vsel %vm246, %v247, %v245
    %v250 = vsel %vm34, %v241, 0
    %v253 = vsel %vm34, %v248, 0
    %255 = vmatprep.subr.mxu0 0.0
    %256 = vmatpush1.msra.mxu0 %v148
    %257 = vmatprep.subr.mxu0 0.0
    %258 = vmatpush1.msra.mxu0 0.0
    %259 = vmatprep.subr.mxu0 0.0
    %260 = vmatpush1.msra.mxu0 0.0
    %261 = vmatprep.subr.mxu0 0.0
    %262 = vmatpush1.msra.mxu0 0.0
    %263 = vmatprep.subr.mxu0 0.0
    %264 = vmatpush1.msra.mxu0 0.0
    %265 = vmatprep.subr.mxu0 0.0
    %266 = vmatpush1.msra.mxu0 0.0
    %267 = vmatprep.subr.mxu0 0.0
    %268 = vmatpush1.msra.mxu0 0.0
    %269 = vmatprep.subr.mxu0 0.0
    %270 = vmatpush1.msra.mxu0 0.0
    %271 = vmatprep.subr.mxu0 0.0
    %272 = vmatpush1.msra.mxu0 0.0
    %273 = vmatprep.subr.mxu0 0.0
    %274 = vmatpush1.msra.mxu0 0.0
    %275 = vmatprep.subr.mxu0 0.0
    %276 = vmatpush1.msra.mxu0 0.0
    %277 = vmatprep.subr.mxu0 0.0
    %278 = vmatpush1.msra.mxu0 0.0
    %279 = vmatprep.subr.mxu0 0.0
    %280 = vmatpush1.msra.mxu0 0.0
    %281 = vmatprep.subr.mxu0 0.0
    %282 = vmatpush1.msra.mxu0 0.0
    %283 = vmatprep.subr.mxu0 0.0
    %284 = vmatpush1.msra.mxu0 0.0
    %285 = vmatprep.subr.mxu0 0.0
    %286 = vmatpush1.msra.mxu0 0.0
    %287 = vmatprep.subr.mxu0 0.0
    %288 = vmatpush1.msra.mxu0 0.0
    %289 = vmatprep.subr.mxu0 0.0
    %290 = vmatpush1.msra.mxu0 0.0
    %291 = vmatprep.subr.mxu0 0.0
    %292 = vmatpush1.msra.mxu0 0.0
    %293 = vmatprep.subr.mxu0 0.0
    %294 = vmatpush1.msra.mxu0 0.0
    %295 = vmatprep.subr.mxu0 0.0
    %296 = vmatpush1.msra.mxu0 0.0
    %297 = vmatprep.subr.mxu0 0.0
    %298 = vmatpush1.msra.mxu0 0.0
    %299 = vmatprep.subr.mxu0 0.0
    %300 = vmatpush1.msra.mxu0 0.0
    %301 = vmatprep.subr.mxu0 0.0
    %302 = vmatpush1.msra.mxu0 0.0
    %303 = vmatprep.subr.mxu0 0.0
    %304 = vmatpush1.msra.mxu0 0.0
    %305 = vmatprep.subr.mxu0 0.0
    %306 = vmatpush1.msra.mxu0 0.0
    %307 = vmatprep.subr.mxu0 0.0
    %308 = vmatpush1.msra.mxu0 0.0
    %309 = vmatprep.subr.mxu0 0.0
    %310 = vmatpush1.msra.mxu0 0.0
    %311 = vmatprep.subr.mxu0 0.0
    %312 = vmatpush1.msra.mxu0 0.0
    %313 = vmatprep.subr.mxu0 0.0
    %314 = vmatpush1.msra.mxu0 0.0
    %315 = vmatprep.subr.mxu0 0.0
    %316 = vmatpush1.msra.mxu0 0.0
    %317 = vmatprep.subr.mxu0 0.0
    %318 = vmatpush1.msra.mxu0 0.0
    %319 = vmatprep.mubr.f32.mxu0 0.0
    %320 = vmatmul.mubr.f32.gmra.mrb[0].mxu0 %v250
    %v321 = vpop.f32.mrb[0].mxu0
    %v322 = vadd.f32 0.0, %v321
    %v323 = vpop.f32.mrb[0].mxu0
    %324 = vmatprep.mubr.f32.mxu0 0.0
    %325 = vmatmul.mubr.f32.gmra.mrb[0].mxu0 %v253
    %v326 = vpop.f32.mrb[0].mxu0
    %v327 = vadd.f32 0.0, %v326
    %v328 = vpop.f32.mrb[0].mxu0
    %329 = vdwg.mxu0
    %v330 = vmax.f32 %v322, 0.0
    %v331 = vmax.f32 %v327, 0.0
    %s332 = scalar_lea.vmem [#allocation2], 32
    %v333 = vld [vmem:[%s332] sm:$0xff]
    %v334 = vld [vmem:[%s332 + $0x8] sm:$0xff]
    %v335 = vld [vmem:[%s332 + $0x10] sm:$0xff]
    %v336 = vld [vmem:[%s332 + $0x18] sm:$0xff]
    %v337 = vmul.f32 %v330, %v330
    %v338 = vmul.f32 %v331, %v331
    %339 = vmatprep.subr.mxu0 0.0
    %340 = vmatpush1.msra.mxu0 %v337
    %341 = vmatprep.subr.mxu0 0.0
    %342 = vmatpush1.msra.mxu0 %v338
    %343 = vmatprep.subr.mxu0 0.0
    %344 = vmatpush1.msra.mxu0 0.0
    %345 = vmatprep.subr.mxu0 0.0
    %346 = vmatpush1.msra.mxu0 0.0
    %347 = vmatprep.subr.mxu0 0.0
    %348 = vmatpush1.msra.mxu0 0.0
    %349 = vmatprep.subr.mxu0 0.0
    %350 = vmatpush1.msra.mxu0 0.0
    %351 = vmatprep.subr.mxu0 0.0
    %352 = vmatpush1.msra.mxu0 0.0
    %353 = vmatprep.subr.mxu0 0.0
    %354 = vmatpush1.msra.mxu0 0.0
    %355 = vmatprep.subr.mxu0 0.0
    %356 = vmatpush1.msra.mxu0 0.0
    %357 = vmatprep.subr.mxu0 0.0
    %358 = vmatpush1.msra.mxu0 0.0
    %359 = vmatprep.subr.mxu0 0.0
    %360 = vmatpush1.msra.mxu0 0.0
    %361 = vmatprep.subr.mxu0 0.0
    %362 = vmatpush1.msra.mxu0 0.0
    %363 = vmatprep.subr.mxu0 0.0
    %364 = vmatpush1.msra.mxu0 0.0
    %365 = vmatprep.subr.mxu0 0.0
    %366 = vmatpush1.msra.mxu0 0.0
    %367 = vmatprep.subr.mxu0 0.0
    %368 = vmatpush1.msra.mxu0 0.0
    %369 = vmatprep.subr.mxu0 0.0
    %370 = vmatpush1.msra.mxu0 0.0
    %371 = vmatprep.subr.mxu0 0.0
    %372 = vmatpush1.msra.mxu0 0.0
    %373 = vmatprep.subr.mxu0 0.0
    %374 = vmatpush1.msra.mxu0 0.0
    %375 = vmatprep.subr.mxu0 0.0
    %376 = vmatpush1.msra.mxu0 0.0
    %377 = vmatprep.subr.mxu0 0.0
    %378 = vmatpush1.msra.mxu0 0.0
    %379 = vmatprep.subr.mxu0 0.0
    %380 = vmatpush1.msra.mxu0 0.0
    %381 = vmatprep.subr.mxu0 0.0
    %382 = vmatpush1.msra.mxu0 0.0
    %383 = vmatprep.subr.mxu0 0.0
    %384 = vmatpush1.msra.mxu0 0.0
    %385 = vmatprep.subr.mxu0 0.0
    %386 = vmatpush1.msra.mxu0 0.0
    %387 = vmatprep.subr.mxu0 0.0
    %388 = vmatpush1.msra.mxu0 0.0
    %389 = vmatprep.subr.mxu0 0.0
    %390 = vmatpush1.msra.mxu0 0.0
    %391 = vmatprep.subr.mxu0 0.0
    %392 = vmatpush1.msra.mxu0 0.0
    %393 = vmatprep.subr.mxu0 0.0
    %394 = vmatpush1.msra.mxu0 0.0
    %395 = vmatprep.subr.mxu0 0.0
    %396 = vmatpush1.msra.mxu0 0.0
    %397 = vmatprep.subr.mxu0 0.0
    %398 = vmatpush1.msra.mxu0 0.0
    %399 = vmatprep.subr.mxu0 0.0
    %400 = vmatpush1.msra.mxu0 0.0
    %401 = vmatprep.subr.mxu0 0.0
    %402 = vmatpush1.msra.mxu0 0.0
    %403 = vmatprep.mubr.f32.mxu0 0.0
    %404 = vmatmul.mubr.f32.gmra.mrb[0].mxu0 %v153
    %v405 = vpop.f32.mrb[0].mxu0
    %v406 = vadd.f32 0.0, %v405
    %v407 = vpop.f32.mrb[0].mxu0
    %408 = vmatprep.mubr.f32.mxu0 0.0
    %409 = vmatmul.mubr.f32.gmra.mrb[0].mxu0 %v156
    %v410 = vpop.f32.mrb[0].mxu0
    %v411 = vadd.f32 0.0, %v410
    %v412 = vpop.f32.mrb[0].mxu0
    %413 = vdwg.mxu0
    %v414 = vmul.f32 %v406, %v54
    %v415 = vmul.f32 %v411, %v56
    %v416 = vrsqrt.pop %v414
    %v417 = vmul.f32 %v414, %v416
    %vm418 = vcmp.eq.f32.partialorder %v414, inf
    %v419 = vsel %vm418, %v414, %v417
    %vm420 = vcmp.eq.f32.partialorder %v414, 0.0
    %v421 = vand.u32 %v414, 2147483648
    %v422 = vsel %vm420, %v421, %v419
    %v423 = vrsqrt.pop %v415
    %v424 = vmul.f32 %v415, %v423
    %vm425 = vcmp.eq.f32.partialorder %v415, inf
    %v426 = vsel %vm425, %v415, %v424
    %vm427 = vcmp.eq.f32.partialorder %v415, 0.0
    %v428 = vand.u32 %v415, 2147483648
    %v429 = vsel %vm427, %v428, %v426
    %vm430 = vcmask 261120
    %v432 = vsel %vm430, %v422, 0
    %v435 = vsel %vm430, %v429, 0
    %437 = vmatprep.subr.mxu0 0.0
    %438 = vmatpush1.msra.mxu0 %v333
    %439 = vmatprep.subr.mxu0 0.0
    %440 = vmatpush1.msra.mxu0 %v334
    %441 = vmatprep.subr.mxu0 0.0
    %442 = vmatpush1.msra.mxu0 %v335
    %443 = vmatprep.subr.mxu0 0.0
    %444 = vmatpush1.msra.mxu0 %v336
    %445 = vmatprep.subr.mxu0 0.0
    %446 = vmatpush1.msra.mxu0 0.0
    %447 = vmatprep.subr.mxu0 0.0
    %448 = vmatpush1.msra.mxu0 0.0
    %449 = vmatprep.subr.mxu0 0.0
    %450 = vmatpush1.msra.mxu0 0.0
    %451 = vmatprep.subr.mxu0 0.0
    %452 = vmatpush1.msra.mxu0 0.0
    %453 = vmatprep.subr.mxu0 0.0
    %454 = vmatpush1.msra.mxu0 0.0
    %455 = vmatprep.subr.mxu0 0.0
    %456 = vmatpush1.msra.mxu0 0.0
    %457 = vmatprep.subr.mxu0 0.0
    %458 = vmatpush1.msra.mxu0 0.0
    %459 = vmatprep.subr.mxu0 0.0
    %460 = vmatpush1.msra.mxu0 0.0
    %461 = vmatprep.subr.mxu0 0.0
    %462 = vmatpush1.msra.mxu0 0.0
    %463 = vmatprep.subr.mxu0 0.0
    %464 = vmatpush1.msra.mxu0 0.0
    %465 = vmatprep.subr.mxu0 0.0
    %466 = vmatpush1.msra.mxu0 0.0
    %467 = vmatprep.subr.mxu0 0.0
    %468 = vmatpush1.msra.mxu0 0.0
    %469 = vmatprep.subr.mxu0 0.0
    %470 = vmatpush1.msra.mxu0 0.0
    %471 = vmatprep.subr.mxu0 0.0
    %472 = vmatpush1.msra.mxu0 0.0
    %473 = vmatprep.subr.mxu0 0.0
    %474 = vmatpush1.msra.mxu0 0.0
    %475 = vmatprep.subr.mxu0 0.0
    %476 = vmatpush1.msra.mxu0 0.0
    %477 = vmatprep.subr.mxu0 0.0
    %478 = vmatpush1.msra.mxu0 0.0
    %479 = vmatprep.subr.mxu0 0.0
    %480 = vmatpush1.msra.mxu0 0.0
    %481 = vmatprep.subr.mxu0 0.0
    %482 = vmatpush1.msra.mxu0 0.0
    %483 = vmatprep.subr.mxu0 0.0
    %484 = vmatpush1.msra.mxu0 0.0
    %485 = vmatprep.subr.mxu0 0.0
    %486 = vmatpush1.msra.mxu0 0.0
    %487 = vmatprep.subr.mxu0 0.0
    %488 = vmatpush1.msra.mxu0 0.0
    %489 = vmatprep.subr.mxu0 0.0
    %490 = vmatpush1.msra.mxu0 0.0
    %491 = vmatprep.subr.mxu0 0.0
    %492 = vmatpush1.msra.mxu0 0.0
    %493 = vmatprep.subr.mxu0 0.0
    %494 = vmatpush1.msra.mxu0 0.0
    %495 = vmatprep.subr.mxu0 0.0
    %496 = vmatpush1.msra.mxu0 0.0
    %497 = vmatprep.subr.mxu0 0.0
    %498 = vmatpush1.msra.mxu0 0.0
    %499 = vmatprep.subr.mxu0 0.0
    %500 = vmatpush1.msra.mxu0 0.0
    %501 = vmatprep.mubr.f32.mxu0 0.0
    %502 = vmatmul.mubr.f32.gmra.mrb[0].mxu0 %v432
    %v503 = vpop.f32.mrb[0].mxu0
    %v504 = vadd.f32 0.0, %v503
    %v505 = vpop.f32.mrb[0].mxu0
    %506 = vmatprep.mubr.f32.mxu0 0.0
    %507 = vmatmul.mubr.f32.gmra.mrb[0].mxu0 %v435
    %v508 = vpop.f32.mrb[0].mxu0
    %v509 = vadd.f32 0.0, %v508
    %v510 = vpop.f32.mrb[0].mxu0
    %511 = vdwg.mxu0
    %v512 = vmax.f32 %v504, 0.0
    %v513 = vmax.f32 %v509, 0.0
    %v514 = vsel %vm430, %v512, -inf
    %v515 = vsel %vm430, %v513, -inf
    %v516 = vmax.f32 %v514, %v515
    %v517 = vrot.slane %v516, 4
    %v518 = vmax.f32 %v516, %v517
    %v519 = vrot.slane %v518, 2
    %v520 = vmax.f32 %v518, %v519
    %v521 = vrot.slane %v520, 1
    %v522 = vmax.f32 %v520, %v521
    %v523 = vld [vmem:[%s3] sm:$0x1]
    %v524 = vmul.f32 %v522, %v523
    %vm525 = vcmask 253952
    %v526 = vsel %vm525, %v524, 0.0
    %527 = vadd.xlane.f32.xlu0 %v526
    %v528 = vpop.xlane.xlu0 %527
    %v529 = vld [vmem:[%s3 + $0x1] sm:$0x1]
    %v530 = vadd.f32 %v528, %v529
    %v531 = vxor.u32 %v530, 2147483648
    %v532 = vmul.f32 %v531, 1.442695
    %v533 = vpow.pop %v532
    %v534 = vadd.f32 %v533, 1.0
    %v535 = vrcp.pop %v534
    %v536 = vmul.f32 1.0, %v535
    %vm537 = vcmask 0
    %538 = vst.msk [vmem:[#allocation5] sm:$0x1] %vm537, %v536
    // Predicated region
    $region22: #{tpu_custom_call.1} parent=1 // pred_check
      _
    $region23: #{tpu_custom_call.1} parent=1 // pred_check_branch
      %540 = sbr.rel (0) target = $region25
    $region24: #{tpu_custom_call.1} parent=1 // pred_region
      %s542 = ssub.s32 16, 16
      %543 = vsyncadd [#allocation4], %s542
      %s545 = sshll.u32 [#allocation5], 4
      %s546 = int_to_ptr.vmem [resolvable:$true] %s545
      %548 = dma.vmem_to_hbm [thread:$0]  %s546, 16, %s4, [#allocation4]
    $region25: #{tpu_custom_call.1} parent=1 // pred_fallthru
      _
    // Predicated region
    $region26: #{tpu_custom_call.1} parent=1 // pred_check
      _
    $region27: #{tpu_custom_call.1} parent=1 // pred_check_branch
      %550 = sbr.rel (0) target = $region29
    $region28: #{tpu_custom_call.1} parent=1 // pred_region
      %551 = dma.done [#allocation4], 16
    $region29: #{tpu_custom_call.1} parent=1 // pred_fallthru
      _
    %552 = vsyncpa [#allocation3], 1
    %553 = vsyncpa [#allocation4], 1

</llo_original>
